<compile_context>
chip_gen: v6e
topology: v6e:2x2x1
jax: 0.10.0
libtpu: 0.0.40
codegen_flags: <defaults>
</compile_context>

<pallas_src>
import functools

import jax
import jax.numpy as jnp
from jax.experimental import pallas as pl
from jax.experimental.pallas import tpu as pltpu


def _dal_kernel(fa_ref, fi_ref, wa_ref, wi_ref, o_ref,
                s_a, s_i, s_aa, s_ii, s_ai, *, n_rows, tile_rows, needs_mask):
    pid = pl.program_id(0)

    @pl.when(pid == 0)
    def _init():
        s_a[...] = jnp.zeros_like(s_a)
        s_i[...] = jnp.zeros_like(s_i)
        s_aa[...] = jnp.zeros_like(s_aa)
        s_ii[...] = jnp.zeros_like(s_ii)
        s_ai[...] = jnp.zeros_like(s_ai)

    fa = fa_ref[...].astype(jnp.float32)        # (TB, D)
    fi = fi_ref[...].astype(jnp.float32)        # (TB, D)
    wa = wa_ref[...].astype(jnp.float32)        # (1, D)
    wi = wi_ref[...].astype(jnp.float32)        # (1, D)

    # 1-unit linear projections: VPU multiply + XLU lane reduce.
    vs_a = jnp.sum(fa * wa, axis=1, keepdims=True)      # (TB, 1)
    vs_i = jnp.sum(fi * wi, axis=1, keepdims=True)      # (TB, 1)

    if needs_mask:
        # Ragged final block: select away rows >= B.  jnp.where is a select,
        # so NaN/Inf garbage in the stale tail of the VMEM buffer is harmless.
        row = jax.lax.broadcasted_iota(jnp.int32, (tile_rows, 1), 0)
        valid = (pid * tile_rows + row) < n_rows
        vs_a = jnp.where(valid, vs_a, 0.0)
        vs_i = jnp.where(valid, vs_i, 0.0)

    # Partial sums for one-pass covariance / variance.
    s_a[...] += jnp.sum(vs_a, axis=0, keepdims=True)
    s_i[...] += jnp.sum(vs_i, axis=0, keepdims=True)
    s_aa[...] += jnp.sum(vs_a * vs_a, axis=0, keepdims=True)
    s_ii[...] += jnp.sum(vs_i * vs_i, axis=0, keepdims=True)
    s_ai[...] += jnp.sum(vs_a * vs_i, axis=0, keepdims=True)

    @pl.when(pid == pl.num_programs(0) - 1)
    def _finalize():
        n = jnp.float32(n_rows)
        mean_a = s_a[...] / n
        mean_i = s_i[...] / n
        cov = s_ai[...] / n - mean_a * mean_i                  # E[xy] - E[x]E[y]
        var_a = (s_aa[...] - s_a[...] * mean_a) / (n - 1.0)    # unbiased (B-1)
        var_i = (s_ii[...] - s_i[...] * mean_i) / (n - 1.0)
        rho = (cov * cov) / ((var_a + 1e-6) * (var_i + 1e-6))
        o_ref[...] = rho


def dal_regularizer(features_age, features_id, w_age, w_id, *, max_block_rows=1024):
    """features_*: (B, D), w_*: (1, D). Returns rho with shape (1,) — matches PyTorch."""
    B, D = features_age.shape
    if B < 2:
        raise ValueError("DAL regularizer needs batch >= 2 (unbiased variance).")

    # Tile rows: keep 2 feature inputs x 2 pipeline buffers of (TB, D) under
    # ~8 MiB so the working set fits every generation's scoped-VMEM default.
    itemsize = jnp.dtype(features_age.dtype).itemsize
    vmem_budget = 8 * 1024 * 1024
    tb_cap = max(8, (vmem_budget // (2 * 2 * D * itemsize)) // 8 * 8)
    TB = int(min(max_block_rows, tb_cap))
    if TB >= B:
        TB = B                      # single block; sublane dim == full array dim
        needs_mask = False
    else:
        TB = (TB // 8) * 8          # sublane-aligned row tile
        needs_mask = (B % TB) != 0  # ragged last block handled in-kernel
    n_steps = -(-B // TB)

    kernel = functools.partial(
        _dal_kernel, n_rows=int(B), tile_rows=TB, needs_mask=needs_mask)

    out = pl.pallas_call(
        kernel,
        out_shape=jax.ShapeDtypeStruct((1, 1), jnp.float32),
        grid_spec=pltpu.PrefetchScalarGridSpec(
            num_scalar_prefetch=0,
            grid=(n_steps,),
            in_specs=[
                pl.BlockSpec((TB, D), lambda i: (i, 0)),
                pl.BlockSpec((TB, D), lambda i: (i, 0)),
                pl.BlockSpec((1, D), lambda i: (0, 0)),
                pl.BlockSpec((1, D), lambda i: (0, 0)),
            ],
            out_specs=pl.BlockSpec((1, 1), lambda i: (0, 0)),
            scratch_shapes=[pltpu.VMEM((1, 1), jnp.float32)] * 5,
        ),
        compiler_params=pltpu.CompilerParams(
            dimension_semantics=("arbitrary",),
            vmem_limit_bytes=32 * 1024 * 1024,
        ),
    )(features_age, features_id, w_age, w_id)
    return out.reshape((1,))   # matches PyTorch output shape (1,)


def _reference(features_age, features_id, w_age, w_id):
    """Pure-JAX reference mirroring the PyTorch forward."""
    vs_a = features_age.astype(jnp.float32) @ w_age.astype(jnp.float32).T   # (B, 1)
    vs_i = features_id.astype(jnp.float32) @ w_id.astype(jnp.float32).T     # (B, 1)
    ca = vs_a - vs_a.mean(axis=0)
    ci = vs_i - vs_i.mean(axis=0)
    cov2 = (ca * ci).mean(axis=0) ** 2
    var_a = vs_a.var(axis=0, ddof=1)
    var_i = vs_i.var(axis=0, ddof=1)
    return cov2 / ((var_a + 1e-6) * (var_i + 1e-6))


if __name__ == "__main__":
    key = jax.random.PRNGKey(0)

    # Case 1: the module-implied small shape (batch=8, n_in=32) — single block.
    B, D = 8, 32
    k_fa, k_fi, k_wa, k_wi, key = jax.random.split(key, 5)
    features_age = jax.random.normal(k_fa, (B, D), dtype=jnp.float32)
    features_id = jax.random.normal(k_fi, (B, D), dtype=jnp.float32)
    bound = 1.0 / (D ** 0.5)   # nn.Linear default init range
    w_age = jax.random.uniform(k_wa, (1, D), dtype=jnp.float32, minval=-bound, maxval=bound)
    w_id = jax.random.uniform(k_wi, (1, D), dtype=jnp.float32, minval=-bound, maxval=bound)

    rho = dal_regularizer(features_age, features_id, w_age, w_id)
    jax.block_until_ready(rho)
    rho_ref = _reference(features_age, features_id, w_age, w_id)
    assert rho.shape == (1,)
    assert jnp.allclose(rho, rho_ref, rtol=1e-4, atol=1e-6), (rho, rho_ref)

    # Case 2: non-aligned B/D with a small row tile to exercise multi-step
    # streaming accumulation, the full-D (non-128) blocks and the ragged-last-
    # block row mask (B=40 with TB=16 -> 3 steps, last step half empty; D=96).
    B2, D2 = 40, 96
    k_fa2, k_fi2, k_wa2, k_wi2, key = jax.random.split(key, 5)
    fa2 = jax.random.normal(k_fa2, (B2, D2), dtype=jnp.float32)
    fi2 = jax.random.normal(k_fi2, (B2, D2), dtype=jnp.float32)
    bound2 = 1.0 / (D2 ** 0.5)
    wa2 = jax.random.uniform(k_wa2, (1, D2), dtype=jnp.float32, minval=-bound2, maxval=bound2)
    wi2 = jax.random.uniform(k_wi2, (1, D2), dtype=jnp.float32, minval=-bound2, maxval=bound2)

    rho2 = dal_regularizer(fa2, fi2, wa2, wi2, max_block_rows=16)
    jax.block_until_ready(rho2)
    rho2_ref = _reference(fa2, fi2, wa2, wi2)
    assert rho2.shape == (1,)
    assert jnp.allclose(rho2, rho2_ref, rtol=1e-4, atol=1e-6), (rho2, rho2_ref)

    # Case 3: bf16 features — cast happens in-kernel, no wrapper-side f32 copy.
    fa3 = fa2.astype(jnp.bfloat16)
    fi3 = fi2.astype(jnp.bfloat16)
    rho3 = dal_regularizer(fa3, fi3, wa2, wi2, max_block_rows=16)
    jax.block_until_ready(rho3)
    rho3_ref = _reference(fa3, fi3, wa2, wi2)
    assert jnp.allclose(rho3, rho3_ref, rtol=5e-2, atol=1e-4), (rho3, rho3_ref)

    print("KERNEL_OK")
</pallas_src>

<mosaic_0001>
module attributes {stable_mosaic.version = 11 : i64} {
  func.func @_dal_kernel(%arg0: i32, %arg1: memref<8x32xf32, #tpu.memory_space<vmem>>, %arg2: memref<8x32xf32, #tpu.memory_space<vmem>>, %arg3: memref<1x32xf32, #tpu.memory_space<vmem>>, %arg4: memref<1x32xf32, #tpu.memory_space<vmem>>, %arg5: memref<1x1xf32, #tpu.memory_space<vmem>>, %arg6: memref<1x1xf32, #tpu.memory_space<vmem>>, %arg7: memref<1x1xf32, #tpu.memory_space<vmem>>, %arg8: memref<1x1xf32, #tpu.memory_space<vmem>>, %arg9: memref<1x1xf32, #tpu.memory_space<vmem>>, %arg10: memref<1x1xf32, #tpu.memory_space<vmem>>) attributes {dimension_semantics = [#tpu.dimension_semantics<arbitrary>], iteration_bounds = array<i64: 1>, scalar_prefetch = 0 : i64, scratch_operands = 5 : i64, tpu.core_type = #tpu.core_type<tc>, window_params = [{transform_indices = @transform_0, window_bounds = array<i64: 8, 32>}, {transform_indices = @transform_1, window_bounds = array<i64: 8, 32>}, {pipeline_mode = #tpu.pipeline_mode<synchronous>, transform_indices = @transform_2, window_bounds = array<i64: 1, 32>}, {pipeline_mode = #tpu.pipeline_mode<synchronous>, transform_indices = @transform_3, window_bounds = array<i64: 1, 32>}, {pipeline_mode = #tpu.pipeline_mode<synchronous>, transform_indices = @transform_4, window_bounds = array<i64: 1, 1>}]} {
    %c0_i32 = arith.constant 0 : i32
    %0 = arith.cmpi eq, %arg0, %c0_i32 : i32
    %1 = arith.extui %0 : i1 to i32
    %c0_i32_0 = arith.constant 0 : i32
    %2 = arith.cmpi ne, %1, %c0_i32_0 : i32
    scf.if %2 {
      %cst_36 = arith.constant 0.000000e+00 : f32
      %46 = vector.broadcast %cst_36 : f32 to vector<1x1xf32>
      %c0_37 = arith.constant 0 : index
      %c0_38 = arith.constant 0 : index
      %47 = vector.load %arg6[%c0_37, %c0_38] : memref<1x1xf32, #tpu.memory_space<vmem>>, vector<1x1xf32>
      tpu.vector_store %arg6[%c0_37, %c0_38], %46 {strides = array<i32>} : memref<1x1xf32, #tpu.memory_space<vmem>>, vector<1x1xf32>,
      %cst_39 = arith.constant 0.000000e+00 : f32
      %48 = vector.broadcast %cst_39 : f32 to vector<1x1xf32>
      %c0_40 = arith.constant 0 : index
      %c0_41 = arith.constant 0 : index
      %49 = vector.load %arg7[%c0_40, %c0_41] : memref<1x1xf32, #tpu.memory_space<vmem>>, vector<1x1xf32>
      tpu.vector_store %arg7[%c0_40, %c0_41], %48 {strides = array<i32>} : memref<1x1xf32, #tpu.memory_space<vmem>>, vector<1x1xf32>,
      %cst_42 = arith.constant 0.000000e+00 : f32
      %50 = vector.broadcast %cst_42 : f32 to vector<1x1xf32>
      %c0_43 = arith.constant 0 : index
      %c0_44 = arith.constant 0 : index
      %51 = vector.load %arg8[%c0_43, %c0_44] : memref<1x1xf32, #tpu.memory_space<vmem>>, vector<1x1xf32>
      tpu.vector_store %arg8[%c0_43, %c0_44], %50 {strides = array<i32>} : memref<1x1xf32, #tpu.memory_space<vmem>>, vector<1x1xf32>,
      %cst_45 = arith.constant 0.000000e+00 : f32
      %52 = vector.broadcast %cst_45 : f32 to vector<1x1xf32>
      %c0_46 = arith.constant 0 : index
      %c0_47 = arith.constant 0 : index
      %53 = vector.load %arg9[%c0_46, %c0_47] : memref<1x1xf32, #tpu.memory_space<vmem>>, vector<1x1xf32>
      tpu.vector_store %arg9[%c0_46, %c0_47], %52 {strides = array<i32>} : memref<1x1xf32, #tpu.memory_space<vmem>>, vector<1x1xf32>,
      %cst_48 = arith.constant 0.000000e+00 : f32
      %54 = vector.broadcast %cst_48 : f32 to vector<1x1xf32>
      %c0_49 = arith.constant 0 : index
      %c0_50 = arith.constant 0 : index
      %55 = vector.load %arg10[%c0_49, %c0_50] : memref<1x1xf32, #tpu.memory_space<vmem>>, vector<1x1xf32>
      tpu.vector_store %arg10[%c0_49, %c0_50], %54 {strides = array<i32>} : memref<1x1xf32, #tpu.memory_space<vmem>>, vector<1x1xf32>,
    } else {
    }
    %c0 = arith.constant 0 : index
    %c0_1 = arith.constant 0 : index
    %3 = vector.load %arg1[%c0, %c0_1] : memref<8x32xf32, #tpu.memory_space<vmem>>, vector<8x32xf32>
    %c0_2 = arith.constant 0 : index
    %c0_3 = arith.constant 0 : index
    %4 = vector.load %arg2[%c0_2, %c0_3] : memref<8x32xf32, #tpu.memory_space<vmem>>, vector<8x32xf32>
    %c0_4 = arith.constant 0 : index
    %c0_5 = arith.constant 0 : index
    %5 = vector.load %arg3[%c0_4, %c0_5] : memref<1x32xf32, #tpu.memory_space<vmem>>, vector<1x32xf32>
    %c0_6 = arith.constant 0 : index
    %c0_7 = arith.constant 0 : index
    %6 = vector.load %arg4[%c0_6, %c0_7] : memref<1x32xf32, #tpu.memory_space<vmem>>, vector<1x32xf32>
    %7 = vector.broadcast %5 : vector<1x32xf32> to vector<8x32xf32>
    %8 = arith.mulf %3, %7 : vector<8x32xf32>
    %cst = arith.constant dense<0.000000e+00> : vector<8xf32>
    %9 = vector.multi_reduction <add>, %8, %cst [1] : vector<8x32xf32> to vector<8xf32>
    %10 = vector.shape_cast %9 : vector<8xf32> to vector<8x1xf32>
    %11 = vector.broadcast %6 : vector<1x32xf32> to vector<8x32xf32>
    %12 = arith.mulf %4, %11 : vector<8x32xf32>
    %cst_8 = arith.constant dense<0.000000e+00> : vector<8xf32>
    %13 = vector.multi_reduction <add>, %12, %cst_8 [1] : vector<8x32xf32> to vector<8xf32>
    %14 = vector.shape_cast %13 : vector<8xf32> to vector<8x1xf32>
    %c0_9 = arith.constant 0 : index
    %c0_10 = arith.constant 0 : index
    %15 = vector.load %arg6[%c0_9, %c0_10] : memref<1x1xf32, #tpu.memory_space<vmem>>, vector<1x1xf32>
    %cst_11 = arith.constant dense<0.000000e+00> : vector<1xf32>
    %16 = vector.multi_reduction <add>, %10, %cst_11 [0] : vector<8x1xf32> to vector<1xf32>
    %17 = vector.shape_cast %16 : vector<1xf32> to vector<1x1xf32>
    %18 = arith.addf %15, %17 : vector<1x1xf32>
    %c0_12 = arith.constant 0 : index
    %c0_13 = arith.constant 0 : index
    %19 = vector.load %arg6[%c0_12, %c0_13] : memref<1x1xf32, #tpu.memory_space<vmem>>, vector<1x1xf32>
    tpu.vector_store %arg6[%c0_12, %c0_13], %18 {strides = array<i32>} : memref<1x1xf32, #tpu.memory_space<vmem>>, vector<1x1xf32>,
    %c0_14 = arith.constant 0 : index
    %c0_15 = arith.constant 0 : index
    %20 = vector.load %arg7[%c0_14, %c0_15] : memref<1x1xf32, #tpu.memory_space<vmem>>, vector<1x1xf32>
    %cst_16 = arith.constant dense<0.000000e+00> : vector<1xf32>
    %21 = vector.multi_reduction <add>, %14, %cst_16 [0] : vector<8x1xf32> to vector<1xf32>
    %22 = vector.shape_cast %21 : vector<1xf32> to vector<1x1xf32>
    %23 = arith.addf %20, %22 : vector<1x1xf32>
    %c0_17 = arith.constant 0 : index
    %c0_18 = arith.constant 0 : index
    %24 = vector.load %arg7[%c0_17, %c0_18] : memref<1x1xf32, #tpu.memory_space<vmem>>, vector<1x1xf32>
    tpu.vector_store %arg7[%c0_17, %c0_18], %23 {strides = array<i32>} : memref<1x1xf32, #tpu.memory_space<vmem>>, vector<1x1xf32>,
    %c0_19 = arith.constant 0 : index
    %c0_20 = arith.constant 0 : index
    %25 = vector.load %arg8[%c0_19, %c0_20] : memref<1x1xf32, #tpu.memory_space<vmem>>, vector<1x1xf32>
    %26 = arith.mulf %10, %10 : vector<8x1xf32>
    %cst_21 = arith.constant dense<0.000000e+00> : vector<1xf32>
    %27 = vector.multi_reduction <add>, %26, %cst_21 [0] : vector<8x1xf32> to vector<1xf32>
    %28 = vector.shape_cast %27 : vector<1xf32> to vector<1x1xf32>
    %29 = arith.addf %25, %28 : vector<1x1xf32>
    %c0_22 = arith.constant 0 : index
    %c0_23 = arith.constant 0 : index
    %30 = vector.load %arg8[%c0_22, %c0_23] : memref<1x1xf32, #tpu.memory_space<vmem>>, vector<1x1xf32>
    tpu.vector_store %arg8[%c0_22, %c0_23], %29 {strides = array<i32>} : memref<1x1xf32, #tpu.memory_space<vmem>>, vector<1x1xf32>,
    %c0_24 = arith.constant 0 : index
    %c0_25 = arith.constant 0 : index
    %31 = vector.load %arg9[%c0_24, %c0_25] : memref<1x1xf32, #tpu.memory_space<vmem>>, vector<1x1xf32>
    %32 = arith.mulf %14, %14 : vector<8x1xf32>
    %cst_26 = arith.constant dense<0.000000e+00> : vector<1xf32>
    %33 = vector.multi_reduction <add>, %32, %cst_26 [0] : vector<8x1xf32> to vector<1xf32>
    %34 = vector.shape_cast %33 : vector<1xf32> to vector<1x1xf32>
    %35 = arith.addf %31, %34 : vector<1x1xf32>
    %c0_27 = arith.constant 0 : index
    %c0_28 = arith.constant 0 : index
    %36 = vector.load %arg9[%c0_27, %c0_28] : memref<1x1xf32, #tpu.memory_space<vmem>>, vector<1x1xf32>
    tpu.vector_store %arg9[%c0_27, %c0_28], %35 {strides = array<i32>} : memref<1x1xf32, #tpu.memory_space<vmem>>, vector<1x1xf32>,
    %c0_29 = arith.constant 0 : index
    %c0_30 = arith.constant 0 : index
    %37 = vector.load %arg10[%c0_29, %c0_30] : memref<1x1xf32, #tpu.memory_space<vmem>>, vector<1x1xf32>
    %38 = arith.mulf %10, %14 : vector<8x1xf32>
    %cst_31 = arith.constant dense<0.000000e+00> : vector<1xf32>
    %39 = vector.multi_reduction <add>, %38, %cst_31 [0] : vector<8x1xf32> to vector<1xf32>
    %40 = vector.shape_cast %39 : vector<1xf32> to vector<1x1xf32>
    %41 = arith.addf %37, %40 : vector<1x1xf32>
    %c0_32 = arith.constant 0 : index
    %c0_33 = arith.constant 0 : index
    %42 = vector.load %arg10[%c0_32, %c0_33] : memref<1x1xf32, #tpu.memory_space<vmem>>, vector<1x1xf32>
    tpu.vector_store %arg10[%c0_32, %c0_33], %41 {strides = array<i32>} : memref<1x1xf32, #tpu.memory_space<vmem>>, vector<1x1xf32>,
    %c0_i32_34 = arith.constant 0 : i32
    %43 = arith.cmpi eq, %arg0, %c0_i32_34 : i32
    %44 = arith.extui %43 : i1 to i32
    %c0_i32_35 = arith.constant 0 : i32
    %45 = arith.cmpi ne, %44, %c0_i32_35 : i32
    scf.if %45 {
      %c0_36 = arith.constant 0 : index
      %c0_37 = arith.constant 0 : index
      %46 = vector.load %arg6[%c0_36, %c0_37] : memref<1x1xf32, #tpu.memory_space<vmem>>, vector<1x1xf32>
      %cst_38 = arith.constant 8.000000e+00 : f32
      %47 = vector.broadcast %cst_38 : f32 to vector<1x1xf32>
      %48 = arith.divf %46, %47 : vector<1x1xf32>
      %c0_39 = arith.constant 0 : index
      %c0_40 = arith.constant 0 : index
      %49 = vector.load %arg7[%c0_39, %c0_40] : memref<1x1xf32, #tpu.memory_space<vmem>>, vector<1x1xf32>
      %cst_41 = arith.constant 8.000000e+00 : f32
      %50 = vector.broadcast %cst_41 : f32 to vector<1x1xf32>
      %51 = arith.divf %49, %50 : vector<1x1xf32>
      %c0_42 = arith.constant 0 : index
      %c0_43 = arith.constant 0 : index
      %52 = vector.load %arg10[%c0_42, %c0_43] : memref<1x1xf32, #tpu.memory_space<vmem>>, vector<1x1xf32>
      %cst_44 = arith.constant 8.000000e+00 : f32
      %53 = vector.broadcast %cst_44 : f32 to vector<1x1xf32>
      %54 = arith.divf %52, %53 : vector<1x1xf32>
      %55 = arith.mulf %48, %51 : vector<1x1xf32>
      %56 = arith.subf %54, %55 : vector<1x1xf32>
      %c0_45 = arith.constant 0 : index
      %c0_46 = arith.constant 0 : index
      %57 = vector.load %arg8[%c0_45, %c0_46] : memref<1x1xf32, #tpu.memory_space<vmem>>, vector<1x1xf32>
      %c0_47 = arith.constant 0 : index
      %c0_48 = arith.constant 0 : index
      %58 = vector.load %arg6[%c0_47, %c0_48] : memref<1x1xf32, #tpu.memory_space<vmem>>, vector<1x1xf32>
      %59 = arith.mulf %58, %48 : vector<1x1xf32>
      %60 = arith.subf %57, %59 : vector<1x1xf32>
      %cst_49 = arith.constant 8.000000e+00 : f32
      %cst_50 = arith.constant 1.000000e+00 : f32
      %61 = arith.subf %cst_49, %cst_50 : f32
      %62 = vector.broadcast %61 : f32 to vector<1x1xf32>
      %63 = arith.divf %60, %62 : vector<1x1xf32>
      %c0_51 = arith.constant 0 : index
      %c0_52 = arith.constant 0 : index
      %64 = vector.load %arg9[%c0_51, %c0_52] : memref<1x1xf32, #tpu.memory_space<vmem>>, vector<1x1xf32>
      %c0_53 = arith.constant 0 : index
      %c0_54 = arith.constant 0 : index
      %65 = vector.load %arg7[%c0_53, %c0_54] : memref<1x1xf32, #tpu.memory_space<vmem>>, vector<1x1xf32>
      %66 = arith.mulf %65, %51 : vector<1x1xf32>
      %67 = arith.subf %64, %66 : vector<1x1xf32>
      %cst_55 = arith.constant 8.000000e+00 : f32
      %cst_56 = arith.constant 1.000000e+00 : f32
      %68 = arith.subf %cst_55, %cst_56 : f32
      %69 = vector.broadcast %68 : f32 to vector<1x1xf32>
      %70 = arith.divf %67, %69 : vector<1x1xf32>
      %71 = arith.mulf %56, %56 : vector<1x1xf32>
      %cst_57 = arith.constant 9.99999997E-7 : f32
      %72 = vector.broadcast %cst_57 : f32 to vector<1x1xf32>
      %73 = arith.addf %63, %72 : vector<1x1xf32>
      %cst_58 = arith.constant 9.99999997E-7 : f32
      %74 = vector.broadcast %cst_58 : f32 to vector<1x1xf32>
      %75 = arith.addf %70, %74 : vector<1x1xf32>
      %76 = arith.mulf %73, %75 : vector<1x1xf32>
      %77 = arith.divf %71, %76 : vector<1x1xf32>
      %c0_59 = arith.constant 0 : index
      %c0_60 = arith.constant 0 : index
      %78 = vector.load %arg5[%c0_59, %c0_60] : memref<1x1xf32, #tpu.memory_space<vmem>>, vector<1x1xf32>
      tpu.vector_store %arg5[%c0_59, %c0_60], %77 {strides = array<i32>} : memref<1x1xf32, #tpu.memory_space<vmem>>, vector<1x1xf32>,
    } else {
    }
    return
  }
  func.func @transform_0(%arg0: i32) -> (i32, i32) {
    %c0_i32 = arith.constant 0 : i32
    %c0_i32_0 = arith.constant 0 : i32
    return %arg0, %c0_i32 : i32, i32
  }
  func.func @transform_1(%arg0: i32) -> (i32, i32) {
    %c0_i32 = arith.constant 0 : i32
    %c0_i32_0 = arith.constant 0 : i32
    return %arg0, %c0_i32 : i32, i32
  }
  func.func @transform_2(%arg0: i32) -> (i32, i32) {
    %c0_i32 = arith.constant 0 : i32
    %c0_i32_0 = arith.constant 0 : i32
    %c0_i32_1 = arith.constant 0 : i32
    return %c0_i32, %c0_i32_0 : i32, i32
  }
  func.func @transform_3(%arg0: i32) -> (i32, i32) {
    %c0_i32 = arith.constant 0 : i32
    %c0_i32_0 = arith.constant 0 : i32
    %c0_i32_1 = arith.constant 0 : i32
    return %c0_i32, %c0_i32_0 : i32, i32
  }
  func.func @transform_4(%arg0: i32) -> (i32, i32) {
    %c0_i32 = arith.constant 0 : i32
    %c0_i32_0 = arith.constant 0 : i32
    %c0_i32_1 = arith.constant 0 : i32
    return %c0_i32, %c0_i32_0 : i32, i32
  }
}

</mosaic_0001>

<llo_original>
// kernel: tpu_custom_call.1
$region0: #{tpu_custom_call.1}
  #allocation0 [shape = 'u32[]', space=smem, size = 0x4, offset = 0x4, fixed_abs, tag = 'smem constant byte address 0x4 - core index']
  #allocation1 [shape = 'u32[144,128]{1,0:T(1,128)}', space=vmem, size = 0x12000, scoped, tag = 'internal scratch']
  #allocation2 [shape = 'f32[1,1]{1,0:T(1,128)}', space=vmem, size = 0x200, scoped, tag = 'scratch operand']
  #allocation3 [shape = 'f32[1,1]{1,0:T(1,128)}', space=vmem, size = 0x200, scoped, tag = 'scratch operand']
  #allocation4 [shape = 'f32[1,1]{1,0:T(1,128)}', space=vmem, size = 0x200, scoped, tag = 'scratch operand']
  #allocation5 [shape = 'f32[1,1]{1,0:T(1,128)}', space=vmem, size = 0x200, scoped, tag = 'scratch operand']
  #allocation6 [shape = 'f32[1,1]{1,0:T(1,128)}', space=vmem, size = 0x200, scoped, tag = 'scratch operand']
  %s0 = inlined_call_operand.hbm [shape: f32[8,32], index: 0, kind: input, shape index: {}]
  %s1 = inlined_call_operand.hbm [shape: f32[8,32], index: 1, kind: input, shape index: {}]
  %s2 = inlined_call_operand.vmem [shape: f32[1,32], index: 2, kind: input, shape index: {}]
  %s3 = inlined_call_operand.vmem [shape: f32[1,32], index: 3, kind: input, shape index: {}]
  %s4 = inlined_call_operand.hbm [shape: f32[1,1], index: 4, kind: output, shape index: {}]
  %s5 = sld [smem:[#allocation0]]
  $region42: #{tpu_custom_call.1} parent=0
    _
  %s7 = ssub.s32 1, %s5
  %s8 = scalar_select 0, %s7, %s5
  $region1: #{tpu_custom_call.1} parent=0
    #allocation7 [shape = 'u8[4096]{0}', space=vmem, size = 0x1000, scoped, tag = 'input window, operand 0, single buffered']
    #allocation8 [shape = 's32[1]{0}', space=sflag, size = 0x4, scoped, tag = 'scoped memory for tpu_custom_call.1']
    #allocation9 [shape = 's32[1]{0}', space=sflag, size = 0x4, scoped, tag = 'scoped memory for tpu_custom_call.1']
    #allocation10 [shape = 'u8[4096]{0}', space=vmem, size = 0x1000, scoped, tag = 'input window, operand 1, single buffered']
    #allocation11 [shape = 's32[1]{0}', space=sflag, size = 0x4, scoped, tag = 'scoped memory for tpu_custom_call.1']
    #allocation12 [shape = 'u8[512]{0}', space=vmem, size = 0x400, scoped, tag = 'output window, operand 0, single buffered']
    %9 = vsyncpa [#allocation8], 0
    %10 = vsyncpa [#allocation11], 0
    %11 = vsyncpa [#allocation9], 0
    // Predicated region
    $region2: #{tpu_custom_call.1} parent=1 // pred_check
      _
    $region3: #{tpu_custom_call.1} parent=1 // pred_check_branch
      %13 = sbr.rel (0) target = $region5
    $region4: #{tpu_custom_call.1} parent=1 // pred_region
      %s15 = ssub.s32 128, 128
      %16 = vsyncadd [#allocation8], %s15
      %s18 = sshll.u32 [#allocation7], 4
      %s19 = int_to_ptr.vmem [resolvable:$true] %s18
      %21 = dma.hbm_to_vmem [thread:$0]  %s0, 128, %s19, [#allocation8]
    $region5: #{tpu_custom_call.1} parent=1 // pred_fallthru
      _
    // Predicated region
    $region6: #{tpu_custom_call.1} parent=1 // pred_check
      _
    $region7: #{tpu_custom_call.1} parent=1 // pred_check_branch
      %23 = sbr.rel (0) target = $region9
    $region8: #{tpu_custom_call.1} parent=1 // pred_region
      %s25 = ssub.s32 128, 128
      %26 = vsyncadd [#allocation11], %s25
      %s28 = sshll.u32 [#allocation10], 4
      %s29 = int_to_ptr.vmem [resolvable:$true] %s28
      %31 = dma.hbm_to_vmem [thread:$0]  %s1, 128, %s29, [#allocation11]
    $region9: #{tpu_custom_call.1} parent=1 // pred_fallthru
      _
    // Predicated region
    $region10: #{tpu_custom_call.1} parent=1 // pred_check
      _
    $region11: #{tpu_custom_call.1} parent=1 // pred_check_branch
      %33 = sbr.rel (0) target = $region13
    $region12: #{tpu_custom_call.1} parent=1 // pred_region
      _
    $region13: #{tpu_custom_call.1} parent=1 // pred_fallthru
      _
    // Predicated region
    $region14: #{tpu_custom_call.1} parent=1 // pred_check
      _
    $region15: #{tpu_custom_call.1} parent=1 // pred_check_branch
      %35 = sbr.rel (0) target = $region17
    $region16: #{tpu_custom_call.1} parent=1 // pred_region
      _
    $region17: #{tpu_custom_call.1} parent=1 // pred_fallthru
      _
    // Predicated region
    $region18: #{tpu_custom_call.1} parent=1 // pred_check
      _
    $region19: #{tpu_custom_call.1} parent=1 // pred_check_branch
      %37 = sbr.rel (0) target = $region21
    $region20: #{tpu_custom_call.1} parent=1 // pred_region
      %38 = dma.done [#allocation8], 128
    $region21: #{tpu_custom_call.1} parent=1 // pred_fallthru
      _
    // Predicated region
    $region22: #{tpu_custom_call.1} parent=1 // pred_check
      _
    $region23: #{tpu_custom_call.1} parent=1 // pred_check_branch
      %40 = sbr.rel (0) target = $region25
    $region24: #{tpu_custom_call.1} parent=1 // pred_region
      %41 = dma.done [#allocation11], 128
    $region25: #{tpu_custom_call.1} parent=1 // pred_fallthru
      _
    %p42 = scmp.eq.s32.totalorder 0, 0
    // Predicated region
    $region26: #{tpu_custom_call.1} parent=1 // pred_check
      %p43 = pneg %p42
    $region27: #{tpu_custom_call.1} parent=1 // pred_check_branch
      %45 = sbr.rel (%p43) target = $region29
    $region28: #{tpu_custom_call.1} parent=1 // pred_region
      %vm46 = vcmask 0
      %47 = vst.msk [vmem:[#allocation2] sm:$0x1] %vm46, 0.0
      %48 = vst.msk [vmem:[#allocation3] sm:$0x1] %vm46, 0.0
      %49 = vst.msk [vmem:[#allocation4] sm:$0x1] %vm46, 0.0
      %50 = vst.msk [vmem:[#allocation5] sm:$0x1] %vm46, 0.0
      %51 = vst.msk [vmem:[#allocation6] sm:$0x1] %vm46, 0.0
    $region29: #{tpu_custom_call.1} parent=1 // pred_fallthru
      _
    %v52 = vld [vmem:[#allocation7] sm:$0xff]
    %v53 = vld [vmem:[#allocation10] sm:$0xff]
    %v54 = vld [vmem:[%s2] sm:$0x1]
    %v55 = vld [vmem:[%s3] sm:$0x1]
    %v57 = vlaneseq
    %v58 = vshrl.u32 %v57, 7
    %v59 = vsub.s32 0, %v58
    %v60 = vrot.slane %v54, %v59
    %v62 = vmul.f32 %v52, %v60
    %vm63 = vcmask 261120
    %v64 = vsel %vm63, %v62, 0.0
    %65 = vadd.xlane.f32.xlu0 %v64
    %v66 = vpop.xlane.xlu0 %65
    %v68 = vlaneseq
    %v69 = vshrl.u32 %v68, 7
    %v70 = vsub.s32 0, %v69
    %v71 = vrot.slane %v55, %v70
    %v73 = vmul.f32 %v53, %v71
    %v74 = vsel %vm63, %v73, 0.0
    %75 = vadd.xlane.f32.xlu0 %v74
    %v76 = vpop.xlane.xlu0 %75
    %v77 = vld [vmem:[#allocation2] sm:$0x1]
    %v78 = vrot.slane %v66, 4
    %v79 = vadd.f32 %v66, %v78
    %v80 = vrot.slane %v79, 2
    %v81 = vadd.f32 %v79, %v80
    %v82 = vrot.slane %v81, 1
    %v83 = vadd.f32 %v81, %v82
    %v84 = vadd.f32 %v77, %v83
    %vm85 = vcmask 0
    %86 = vst.msk [vmem:[#allocation2] sm:$0x1] %vm85, %v84
    %v87 = vld [vmem:[#allocation3] sm:$0x1]
    %v88 = vrot.slane %v76, 4
    %v89 = vadd.f32 %v76, %v88
    %v90 = vrot.slane %v89, 2
    %v91 = vadd.f32 %v89, %v90
    %v92 = vrot.slane %v91, 1
    %v93 = vadd.f32 %v91, %v92
    %v94 = vadd.f32 %v87, %v93
    %95 = vst.msk [vmem:[#allocation3] sm:$0x1] %vm85, %v94
    %v96 = vld [vmem:[#allocation4] sm:$0x1]
    %v97 = vmul.f32 %v66, %v66
    %v98 = vrot.slane %v97, 4
    %v99 = vadd.f32 %v97, %v98
    %v100 = vrot.slane %v99, 2
    %v101 = vadd.f32 %v99, %v100
    %v102 = vrot.slane %v101, 1
    %v103 = vadd.f32 %v101, %v102
    %v104 = vadd.f32 %v96, %v103
    %105 = vst.msk [vmem:[#allocation4] sm:$0x1] %vm85, %v104
    %v106 = vld [vmem:[#allocation5] sm:$0x1]
    %v107 = vmul.f32 %v76, %v76
    %v108 = vrot.slane %v107, 4
    %v109 = vadd.f32 %v107, %v108
    %v110 = vrot.slane %v109, 2
    %v111 = vadd.f32 %v109, %v110
    %v112 = vrot.slane %v111, 1
    %v113 = vadd.f32 %v111, %v112
    %v114 = vadd.f32 %v106, %v113
    %115 = vst.msk [vmem:[#allocation5] sm:$0x1] %vm85, %v114
    %v116 = vld [vmem:[#allocation6] sm:$0x1]
    %v117 = vmul.f32 %v66, %v76
    %v118 = vrot.slane %v117, 4
    %v119 = vadd.f32 %v117, %v118
    %v120 = vrot.slane %v119, 2
    %v121 = vadd.f32 %v119, %v120
    %v122 = vrot.slane %v121, 1
    %v123 = vadd.f32 %v121, %v122
    %v124 = vadd.f32 %v116, %v123
    %125 = vst.msk [vmem:[#allocation6] sm:$0x1] %vm85, %v124
    // Predicated region
    $region30: #{tpu_custom_call.1} parent=1 // pred_check
      %p126 = pneg %p42
    $region31: #{tpu_custom_call.1} parent=1 // pred_check_branch
      %128 = sbr.rel (%p126) target = $region33
    $region32: #{tpu_custom_call.1} parent=1 // pred_region
      %v129 = vld [vmem:[#allocation2] sm:$0x1]
      %v130 = vrcp.pop 8.0
      %v131 = vmul.f32 %v129, %v130
      %v132 = vld [vmem:[#allocation3] sm:$0x1]
      %v133 = vmul.f32 %v132, %v130
      %v134 = vld [vmem:[#allocation6] sm:$0x1]
      %v135 = vmul.f32 %v134, %v130
      %v136 = vmul.f32 %v131, %v133
      %v137 = vsub.f32 %v135, %v136
      %v138 = vld [vmem:[#allocation4] sm:$0x1]
      %v139 = vmul.f32 %v129, %v131
      %v140 = vsub.f32 %v138, %v139
      %v141 = vrcp.pop 7.0
      %v142 = vmul.f32 %v140, %v141
      %v143 = vld [vmem:[#allocation5] sm:$0x1]
      %v144 = vmul.f32 %v132, %v133
      %v145 = vsub.f32 %v143, %v144
      %v146 = vmul.f32 %v145, %v141
      %v147 = vmul.f32 %v137, %v137
      %v148 = vadd.f32 %v142, 1e-06
      %v149 = vadd.f32 %v146, 1e-06
      %v150 = vmul.f32 %v148, %v149
      %v151 = vrcp.pop %v150
      %v152 = vmul.f32 %v147, %v151
      %153 = vst.msk [vmem:[#allocation12] sm:$0x1] %vm85, %v152
    $region33: #{tpu_custom_call.1} parent=1 // pred_fallthru
      _
    // Predicated region
    $region34: #{tpu_custom_call.1} parent=1 // pred_check
      _
    $region35: #{tpu_custom_call.1} parent=1 // pred_check_branch
      %155 = sbr.rel (0) target = $region37
    $region36: #{tpu_custom_call.1} parent=1 // pred_region
      %s157 = ssub.s32 16, 16
      %158 = vsyncadd [#allocation9], %s157
      %s160 = sshll.u32 [#allocation12], 4
      %s161 = int_to_ptr.vmem [resolvable:$true] %s160
      %163 = dma.vmem_to_hbm [thread:$0]  %s161, 16, %s4, [#allocation9]
    $region37: #{tpu_custom_call.1} parent=1 // pred_fallthru
      _
    // Predicated region
    $region38: #{tpu_custom_call.1} parent=1 // pred_check
      _
    $region39: #{tpu_custom_call.1} parent=1 // pred_check_branch
      %165 = sbr.rel (0) target = $region41
    $region40: #{tpu_custom_call.1} parent=1 // pred_region
      %166 = dma.done [#allocation9], 16
    $region41: #{tpu_custom_call.1} parent=1 // pred_fallthru
      _
    %167 = vsyncpa [#allocation8], 1
    %168 = vsyncpa [#allocation11], 1
    %169 = vsyncpa [#allocation9], 1

</llo_original>
